<compile_context>
chip_gen: v5e
topology: v5e:2x2
jax: 0.10.0
libtpu: 0.0.40
codegen_flags: <defaults>
</compile_context>

<pallas_src>
import math
from functools import partial

import numpy as np
import jax
import jax.numpy as jnp
from jax import lax
from jax.experimental import pallas as pl
from jax.experimental.pallas import tpu as pltpu


# ------------------- generation-dependent VMEM budget / tiling -------------------
def _default_vmem_limit():
    cap = None
    try:
        cap = getattr(pltpu.get_tpu_info(), "vmem_capacity_bytes", None)
    except Exception:
        cap = None
    if not cap:
        cap = 64 * 1024 * 1024          # conservative fallback = v7x physical VMEM
    # leave headroom for Mosaic internal scratch and double-buffered blocks
    return int(min(cap * 3 // 4, 112 * 1024 * 1024))


VMEM_LIMIT = _default_vmem_limit()
# bigger row tiles when the generation has more VMEM (amortizes per-step overhead)
ROW_TARGET = 256 if VMEM_LIMIT <= 48 * 1024 * 1024 else 512


def _row_align(dtype):
    """Sublane packing of the dtype: 8 rows (f32), 16 (bf16), 32 (int8/fp8)."""
    return max(8, 32 // np.dtype(dtype).itemsize)


def _pick_tile(n, target, align):
    """Largest tile <= target that divides n and is `align`-aligned (else n)."""
    if n <= target:
        return n
    t = (target // align) * align
    while t >= align:
        if n % t == 0:
            return t
        t -= align
    return n


# ----------------- fused RMSNorm + QKV projection + RoPE (+ q scale) -----------------
def _rope_rotate_half(x, cos_t, sin_t, n_h, hd):
    """Rotate-half RoPE over a lane-dense (rows, n_h*hd) f32 slab whose per-head
    columns were de-interleaved in the wrapper ([real half | imag half] per head).
    Runs once per token in this kernel (hoisted out of the attention kv loop).
    # TODO(synk): when head_dim % 128 == 0 the per-head slice/concat below can be
    # replaced by pltpu.roll (XLU lane rotation) on the full slab.
    """
    hd2 = hd // 2
    outs = []
    for h in range(n_h):
        xh = x[:, h * hd:(h + 1) * hd]
        rot = jnp.concatenate([xh[:, hd2:], xh[:, :hd2]], axis=-1)
        outs.append(xh * cos_t + rot * sin_t)
    return jnp.concatenate(outs, axis=-1)


def _norm_qkv_rope_kernel(x_ref, nw_ref, cos_ref, sin_ref, wq_ref, wk_ref, wv_ref,
                          q_ref, k_ref, v_ref, *, eps, n_heads, n_kv_heads, head_dim):
    # RMSNorm statistics in f32; matmul operands stay in the input dtype and the
    # MXU accumulates in f32 via preferred_element_type (no f32 operand upcasts).
    xf = x_ref[...].astype(jnp.float32)
    ms = jnp.mean(xf * xf, axis=-1, keepdims=True)
    xn = (xf * lax.rsqrt(ms + eps)
          * nw_ref[...].astype(jnp.float32)).astype(x_ref.dtype)

    q = jnp.dot(xn, wq_ref[...], preferred_element_type=jnp.float32)
    k = jnp.dot(xn, wk_ref[...], preferred_element_type=jnp.float32)
    v = jnp.dot(xn, wv_ref[...], preferred_element_type=jnp.float32)

    cos_t = cos_ref[...]                              # (tm, hd) f32, rotate-half form
    sin_t = sin_ref[...]
    q_ref[...] = _rope_rotate_half(q, cos_t, sin_t, n_heads, head_dim).astype(q_ref.dtype)
    k_ref[...] = _rope_rotate_half(k, cos_t, sin_t, n_kv_heads, head_dim).astype(k_ref.dtype)
    v_ref[...] = v.astype(v_ref.dtype)


def fused_norm_qkv_rope(x2d, norm_w, cos_cat, sin_sgn, wq, wk, wv, eps, *,
                        n_heads, n_kv_heads, head_dim, seq_len):
    R, D = x2d.shape
    Nq, Nkv = wq.shape[1], wk.shape[1]
    tm = _pick_tile(seq_len, ROW_TARGET, _row_align(x2d.dtype))   # divides T (and B*T)
    nt = seq_len // tm
    kernel = partial(_norm_qkv_rope_kernel, eps=eps, n_heads=n_heads,
                     n_kv_heads=n_kv_heads, head_dim=head_dim)
    return pl.pallas_call(
        kernel,
        grid=(R // tm,),
        in_specs=[
            pl.BlockSpec((tm, D), lambda i: (i, 0)),
            pl.BlockSpec((1, D), lambda i: (0, 0)),
            pl.BlockSpec((tm, head_dim), lambda i: (i % nt, 0)),   # position block
            pl.BlockSpec((tm, head_dim), lambda i: (i % nt, 0)),
            pl.BlockSpec((D, Nq), lambda i: (0, 0)),
            pl.BlockSpec((D, Nkv), lambda i: (0, 0)),
            pl.BlockSpec((D, Nkv), lambda i: (0, 0)),
        ],
        out_specs=(
            pl.BlockSpec((tm, Nq), lambda i: (i, 0)),
            pl.BlockSpec((tm, Nkv), lambda i: (i, 0)),
            pl.BlockSpec((tm, Nkv), lambda i: (i, 0)),
        ),
        out_shape=(
            jax.ShapeDtypeStruct((R, Nq), x2d.dtype),
            jax.ShapeDtypeStruct((R, Nkv), x2d.dtype),
            jax.ShapeDtypeStruct((R, Nkv), x2d.dtype),
        ),
        compiler_params=pltpu.CompilerParams(
            dimension_semantics=("parallel",), vmem_limit_bytes=VMEM_LIMIT),
    )(x2d, norm_w.reshape(1, -1), cos_cat, sin_sgn, wq, wk, wv)


# ----------------------- flash causal attention (GQA, pre-RoPE'd) -----------------------
def _flash_attn_kernel(q_ref, k_ref, v_ref, o_ref, m_ref, l_ref, acc_ref, *,
                       n_heads, n_kv_heads, head_dim, tq, tk):
    qi = pl.program_id(1)
    ki = pl.program_id(2)
    n_rep = n_heads // n_kv_heads

    @pl.when(ki == 0)
    def _init():
        m_ref[...] = jnp.full_like(m_ref, -jnp.inf)
        l_ref[...] = jnp.zeros_like(l_ref)
        acc_ref[...] = jnp.zeros_like(acc_ref)

    q_start = qi * tq
    k_start = ki * tk

    # skip kv tiles entirely above the causal diagonal (their K/V DMA is also
    # deduplicated by the min(qi, ki) index maps in the wrapper)
    @pl.when(k_start <= q_start + (tq - 1))
    def _compute():
        q = q_ref[0]                       # (tq, n_heads*hd)  RoPE'd, pre-scaled
        k = k_ref[0]                       # (tk, n_kv_heads*hd) RoPE'd
        v = v_ref[0]
        row = q_start + lax.broadcasted_iota(jnp.int32, (tq, tk), 0)
        col = k_start + lax.broadcasted_iota(jnp.int32, (tq, tk), 1)
        causal = col <= row

        for h in range(n_heads):
            g = h // n_rep                 # GQA: alias the kv head, never repeat
            qh = q[:, h * head_dim:(h + 1) * head_dim]
            kh = k[:, g * head_dim:(g + 1) * head_dim]
            vh = v[:, g * head_dim:(g + 1) * head_dim]

            s = lax.dot_general(qh, kh, (((1,), (1,)), ((), ())),
                                preferred_element_type=jnp.float32)
            s = jnp.where(causal, s, -1e30)

            m_prev = m_ref[:, h:h + 1]
            l_prev = l_ref[:, h:h + 1]
            m_new = jnp.maximum(m_prev, jnp.max(s, axis=-1, keepdims=True))
            alpha = jnp.exp(m_prev - m_new)
            p = jnp.exp(s - m_new)
            l_ref[:, h:h + 1] = alpha * l_prev + jnp.sum(p, axis=-1, keepdims=True)
            acc_ref[:, h * head_dim:(h + 1) * head_dim] = (
                alpha * acc_ref[:, h * head_dim:(h + 1) * head_dim]
                + lax.dot_general(p.astype(vh.dtype), vh, (((1,), (0,)), ((), ())),
                                  preferred_element_type=jnp.float32))
            m_ref[:, h:h + 1] = m_new

    @pl.when(ki == pl.num_programs(2) - 1)
    def _finalize():
        acc = acc_ref[...]
        l = l_ref[...]
        # exact normalization (no approx reciprocal); single lane-dense store
        outs = [acc[:, h * head_dim:(h + 1) * head_dim] / l[:, h:h + 1]
                for h in range(n_heads)]
        o_ref[0] = jnp.concatenate(outs, axis=-1).astype(o_ref.dtype)


def causal_flash_attention(q, k, v, *, n_heads, n_kv_heads, head_dim):
    B, T, Dq = q.shape
    Dkv = k.shape[-1]
    tq = _pick_tile(T, ROW_TARGET, _row_align(q.dtype))
    tk = tq
    assert tq == tk, "causal-skip predicate and kv-DMA dedup assume square tiles"
    kernel = partial(_flash_attn_kernel, n_heads=n_heads, n_kv_heads=n_kv_heads,
                     head_dim=head_dim, tq=tq, tk=tk)
    # K/V tiles above the diagonal alias the already-fetched diagonal block so the
    # pipeliner skips their DMA (compute for them is skipped inside the kernel).
    kv_index = lambda b, qi, ki: (b, jnp.minimum(qi, ki), 0)
    return pl.pallas_call(
        kernel,
        grid=(B, T // tq, T // tk),
        in_specs=[
            pl.BlockSpec((1, tq, Dq), lambda b, qi, ki: (b, qi, 0)),
            pl.BlockSpec((1, tk, Dkv), kv_index),
            pl.BlockSpec((1, tk, Dkv), kv_index),
        ],
        out_specs=pl.BlockSpec((1, tq, Dq), lambda b, qi, ki: (b, qi, 0)),
        out_shape=jax.ShapeDtypeStruct((B, T, Dq), q.dtype),
        scratch_shapes=[
            pltpu.VMEM((tq, n_heads), jnp.float32),              # running max (lane-dense)
            pltpu.VMEM((tq, n_heads), jnp.float32),              # running sum (lane-dense)
            pltpu.VMEM((tq, n_heads * head_dim), jnp.float32),   # output accumulator slab
        ],
        compiler_params=pltpu.CompilerParams(
            dimension_semantics=("parallel", "parallel", "arbitrary"),
            vmem_limit_bytes=VMEM_LIMIT),
    )(q, k, v)


# ------------------------- output projection + residual (K-tiled) -------------------------
def _matmul_residual_kernel(a_ref, w_ref, r_ref, o_ref, acc_ref):
    @pl.when(pl.program_id(2) == 0)
    def _():
        acc_ref[...] = jnp.zeros_like(acc_ref)

    # operands stay in the input dtype; MXU accumulates in f32
    acc_ref[...] += jnp.dot(a_ref[...], w_ref[...],
                            preferred_element_type=jnp.float32)

    @pl.when(pl.program_id(2) == pl.num_programs(2) - 1)
    def _():
        o_ref[...] = (acc_ref[...] + r_ref[...].astype(jnp.float32)).astype(o_ref.dtype)


def fused_proj_residual(a2d, w, res2d):
    M, K = a2d.shape
    N = w.shape[1]
    tm = _pick_tile(M, ROW_TARGET, _row_align(a2d.dtype))
    tn = _pick_tile(N, 256, 128)
    tk = _pick_tile(K, 512, 128)
    return pl.pallas_call(
        _matmul_residual_kernel,
        grid=(M // tm, N // tn, K // tk),
        in_specs=[
            pl.BlockSpec((tm, tk), lambda i, j, k: (i, k)),
            pl.BlockSpec((tk, tn), lambda i, j, k: (k, j)),
            pl.BlockSpec((tm, tn), lambda i, j, k: (i, j)),
        ],
        out_specs=pl.BlockSpec((tm, tn), lambda i, j, k: (i, j)),
        out_shape=jax.ShapeDtypeStruct((M, N), a2d.dtype),
        scratch_shapes=[pltpu.VMEM((tm, tn), jnp.float32)],
        compiler_params=pltpu.CompilerParams(
            dimension_semantics=("parallel", "parallel", "arbitrary"),
            vmem_limit_bytes=VMEM_LIMIT),
    )(a2d, w, res2d)


# ---------------- fused RMSNorm + SwiGLU FFN + residual (hidden-dim tiled) ----------------
def _norm_ffn_residual_kernel(h_ref, nw_ref, w1_ref, w3_ref, w2_ref,
                              o_ref, hn_ref, acc_ref, *, eps):
    hi = pl.program_id(1)

    @pl.when(hi == 0)
    def _():
        hf = h_ref[...].astype(jnp.float32)
        acc_ref[...] = hf                               # seed with the residual
        ms = jnp.mean(hf * hf, axis=-1, keepdims=True)
        # normalized activation computed once, cached and reused for every hidden tile
        hn_ref[...] = (hf * lax.rsqrt(ms + eps)
                       * nw_ref[...].astype(jnp.float32)).astype(hn_ref.dtype)

    hn = hn_ref[...]
    a1 = jnp.dot(hn, w1_ref[...], preferred_element_type=jnp.float32)
    a3 = jnp.dot(hn, w3_ref[...], preferred_element_type=jnp.float32)
    g = (a1 * jax.nn.sigmoid(a1) * a3).astype(w2_ref.dtype)     # silu(w1 x) * (w3 x)
    acc_ref[...] += jnp.dot(g, w2_ref[...], preferred_element_type=jnp.float32)

    @pl.when(hi == pl.num_programs(1) - 1)
    def _():
        o_ref[...] = acc_ref[...].astype(o_ref.dtype)


def fused_norm_ffn_residual(h2d, norm_w, w1, w3, w2, eps):
    R, D = h2d.shape
    H = w1.shape[1]
    tm = _pick_tile(R, ROW_TARGET, _row_align(h2d.dtype))
    th = H if H % 128 != 0 else _pick_tile(H, 512, 128)
    return pl.pallas_call(
        partial(_norm_ffn_residual_kernel, eps=eps),
        grid=(R // tm, H // th),
        in_specs=[
            pl.BlockSpec((tm, D), lambda i, hi: (i, 0)),
            pl.BlockSpec((1, D), lambda i, hi: (0, 0)),
            pl.BlockSpec((D, th), lambda i, hi: (0, hi)),
            pl.BlockSpec((D, th), lambda i, hi: (0, hi)),
            pl.BlockSpec((th, D), lambda i, hi: (hi, 0)),
        ],
        out_specs=pl.BlockSpec((tm, D), lambda i, hi: (i, 0)),
        out_shape=jax.ShapeDtypeStruct((R, D), h2d.dtype),
        scratch_shapes=[pltpu.VMEM((tm, D), h2d.dtype),      # cached RMSNorm'd activation
                        pltpu.VMEM((tm, D), jnp.float32)],    # f32 output accumulator
        compiler_params=pltpu.CompilerParams(
            dimension_semantics=("parallel", "arbitrary"),
            vmem_limit_bytes=VMEM_LIMIT),
    )(h2d, norm_w.reshape(1, -1), w1, w3, w2)


# --------------------------------------- full block ---------------------------------------
def transformer_block(params, x, freqs_cos, freqs_sin, *, n_heads, n_kv_heads, eps):
    B, T, D = x.shape
    assert D % n_heads == 0 and n_heads % n_kv_heads == 0
    head_dim = D // n_heads
    assert head_dim % 2 == 0
    R = B * T
    x2d = x.reshape(R, D)

    # One-time weight prep (cached per layer in a real model):
    #  (a) de-interleave wq/wk output columns per head so RoPE can be applied in
    #      rotate-half form; scores are invariant to this SHARED q/k permutation
    #      (wq and wk MUST be permuted together; v/wo are untouched).
    #  (b) fold the 1/sqrt(head_dim) attention scale into wq (RoPE is linear).
    perm = np.concatenate([np.arange(0, head_dim, 2), np.arange(1, head_dim, 2)])
    pq = (np.arange(n_heads)[:, None] * head_dim + perm[None, :]).reshape(-1)
    pk = (np.arange(n_kv_heads)[:, None] * head_dim + perm[None, :]).reshape(-1)
    scale = 1.0 / math.sqrt(head_dim)
    wq = params["wq"][:, pq] * scale
    wk = params["wk"][:, pk]
    cos_cat = jnp.concatenate([freqs_cos, freqs_cos], axis=-1).astype(jnp.float32)   # (T, hd)
    sin_sgn = jnp.concatenate([-freqs_sin, freqs_sin], axis=-1).astype(jnp.float32)  # (T, hd)

    # 1) fused RMSNorm + QKV projection + RoPE (+ scale folded into wq)
    q2d, k2d, v2d = fused_norm_qkv_rope(
        x2d, params["attn_norm"], cos_cat, sin_sgn, wq, wk, params["wv"], eps,
        n_heads=n_heads, n_kv_heads=n_kv_heads, head_dim=head_dim, seq_len=T)
    q = q2d.reshape(B, T, n_heads * head_dim)          # free reshapes, no transpose
    k = k2d.reshape(B, T, n_kv_heads * head_dim)
    v = v2d.reshape(B, T, n_kv_heads * head_dim)

    # 2) flash causal attention (GQA), lane-dense (B, T, D) output
    attn = causal_flash_attention(q, k, v, n_heads=n_heads,
                                  n_kv_heads=n_kv_heads, head_dim=head_dim)

    # 3) output projection + residual add
    h2d = fused_proj_residual(attn.reshape(R, D), params["wo"], x2d)

    # 4) fused RMSNorm + SwiGLU FFN + residual (dropout p=0.0 -> identity)
    out2d = fused_norm_ffn_residual(h2d, params["ff_norm"],
                                    params["w1"], params["w3"], params["w2"], eps)
    return out2d.reshape(B, T, D)


# ----------------------- pure-JAX reference (correctness check) -----------------------
def _apply_rope_ref(xq, xk, freqs_cos, freqs_sin):
    def rot(x):
        xr = x.reshape(x.shape[:-1] + (-1, 2))
        x_r, x_i = xr[..., 0], xr[..., 1]
        c = freqs_cos[None, :, None, :]
        s = freqs_sin[None, :, None, :]
        o_r = x_r * c - x_i * s
        o_i = x_r * s + x_i * c
        return jnp.stack([o_r, o_i], axis=-1).reshape(x.shape)
    return rot(xq), rot(xk)


def reference_block(params, x, freqs_cos, freqs_sin, *, n_heads, n_kv_heads, eps):
    B, T, D = x.shape
    head_dim = D // n_heads
    n_rep = n_heads // n_kv_heads

    def rms(y, w):
        ms = jnp.mean(y * y, axis=-1, keepdims=True)
        return y * lax.rsqrt(ms + eps) * w

    xn = rms(x, params["attn_norm"])
    xq = (xn @ params["wq"]).reshape(B, T, n_heads, head_dim)
    xk = (xn @ params["wk"]).reshape(B, T, n_kv_heads, head_dim)
    xv = (xn @ params["wv"]).reshape(B, T, n_kv_heads, head_dim)
    xq, xk = _apply_rope_ref(xq, xk, freqs_cos, freqs_sin)
    xk = jnp.repeat(xk, n_rep, axis=2)
    xv = jnp.repeat(xv, n_rep, axis=2)
    q, k, v = (a.transpose(0, 2, 1, 3) for a in (xq, xk, xv))
    scores = jnp.einsum("bhqd,bhkd->bhqk", q, k) / math.sqrt(head_dim)
    mask = jnp.tril(jnp.ones((T, T), dtype=bool))
    scores = jnp.where(mask[None, None], scores, -jnp.inf)
    p = jax.nn.softmax(scores, axis=-1)
    o = jnp.einsum("bhqk,bhkd->bhqd", p, v)
    o = o.transpose(0, 2, 1, 3).reshape(B, T, D)
    h = x + o @ params["wo"]
    hn = rms(h, params["ff_norm"])
    ff = (jax.nn.silu(hn @ params["w1"]) * (hn @ params["w3"])) @ params["w2"]
    return h + ff


# --------------------------------------------- main ---------------------------------------------
if __name__ == "__main__":
    B, T, D = 2, 16, 128
    n_heads, n_kv_heads = 4, 2
    head_dim = D // n_heads
    hidden_dim, hidden_dim_multiplier, multiple_of = 128, 2, 16
    hdim = int(2 * hidden_dim_multiplier * hidden_dim / 3)
    hdim = multiple_of * ((hdim + multiple_of - 1) // multiple_of)  # = 176
    eps = 1e-5

    key = jax.random.PRNGKey(0)
    keys = jax.random.split(key, 8)
    init = lambda k, shp: 0.02 * jax.random.normal(k, shp, dtype=jnp.float32)
    params = {
        "wq": init(keys[0], (D, n_heads * head_dim)),
        "wk": init(keys[1], (D, n_kv_heads * head_dim)),
        "wv": init(keys[2], (D, n_kv_heads * head_dim)),
        "wo": init(keys[3], (D, D)),
        "w1": init(keys[4], (D, hdim)),
        "w2": init(keys[5], (hdim, D)),
        "w3": init(keys[6], (D, hdim)),
        "attn_norm": jnp.ones((D,), jnp.float32),
        "ff_norm": jnp.ones((D,), jnp.float32),
    }
    x = jax.random.normal(keys[7], (B, T, D), dtype=jnp.float32)

    # rotary frequencies (llama-style precompute), shape (T, head_dim//2)
    inv = 1.0 / (10000.0 ** (jnp.arange(0, head_dim, 2, dtype=jnp.float32) / head_dim))
    freqs = jnp.outer(jnp.arange(T, dtype=jnp.float32), inv)
    freqs_cos, freqs_sin = jnp.cos(freqs), jnp.sin(freqs)

    out = transformer_block(
        params, x, freqs_cos, freqs_sin,
        n_heads=n_heads, n_kv_heads=n_kv_heads, eps=eps,
    )
    out = jax.block_until_ready(out)

    ref = reference_block(
        params, x, freqs_cos, freqs_sin,
        n_heads=n_heads, n_kv_heads=n_kv_heads, eps=eps,
    )
    assert out.shape == (B, T, D)
    assert np.allclose(np.asarray(out), np.asarray(ref), rtol=2e-2, atol=2e-2), (
        "Pallas output mismatch vs JAX reference"
    )
    print("KERNEL_OK")
</pallas_src>

<mosaic_0001>
module attributes {stable_mosaic.version = 11 : i64} {
  func.func @_norm_qkv_rope_kernel(%arg0: i32, %arg1: memref<16x128xf32, #tpu.memory_space<vmem>>, %arg2: memref<1x128xf32, #tpu.memory_space<vmem>>, %arg3: memref<16x32xf32, #tpu.memory_space<vmem>>, %arg4: memref<16x32xf32, #tpu.memory_space<vmem>>, %arg5: memref<128x128xf32, #tpu.memory_space<vmem>>, %arg6: memref<128x64xf32, #tpu.memory_space<vmem>>, %arg7: memref<128x64xf32, #tpu.memory_space<vmem>>, %arg8: memref<16x128xf32, #tpu.memory_space<vmem>>, %arg9: memref<16x64xf32, #tpu.memory_space<vmem>>, %arg10: memref<16x64xf32, #tpu.memory_space<vmem>>) attributes {dimension_semantics = [#tpu.dimension_semantics<parallel>], iteration_bounds = array<i64: 2>, scalar_prefetch = 0 : i64, scratch_operands = 0 : i64, tpu.core_type = #tpu.core_type<tc>, window_params = [{transform_indices = @transform_0, window_bounds = array<i64: 16, 128>}, {pipeline_mode = #tpu.pipeline_mode<synchronous>, transform_indices = @transform_1, window_bounds = array<i64: 1, 128>}, {transform_indices = @transform_2, window_bounds = array<i64: 16, 32>}, {transform_indices = @transform_3, window_bounds = array<i64: 16, 32>}, {pipeline_mode = #tpu.pipeline_mode<synchronous>, transform_indices = @transform_4, window_bounds = array<i64: 128, 128>}, {pipeline_mode = #tpu.pipeline_mode<synchronous>, transform_indices = @transform_5, window_bounds = array<i64: 128, 64>}, {pipeline_mode = #tpu.pipeline_mode<synchronous>, transform_indices = @transform_6, window_bounds = array<i64: 128, 64>}, {transform_indices = @transform_7, window_bounds = array<i64: 16, 128>}, {transform_indices = @transform_8, window_bounds = array<i64: 16, 64>}, {transform_indices = @transform_9, window_bounds = array<i64: 16, 64>}]} {
    %c0 = arith.constant 0 : index
    %c0_0 = arith.constant 0 : index
    %0 = vector.load %arg1[%c0, %c0_0] : memref<16x128xf32, #tpu.memory_space<vmem>>, vector<16x128xf32>
    %1 = arith.mulf %0, %0 : vector<16x128xf32>
    %cst = arith.constant dense<0.000000e+00> : vector<16xf32>
    %2 = vector.multi_reduction <add>, %1, %cst [1] : vector<16x128xf32> to vector<16xf32>
    %3 = vector.shape_cast %2 : vector<16xf32> to vector<16x1xf32>
    %cst_1 = arith.constant 1.280000e+02 : f32
    %4 = vector.broadcast %cst_1 : f32 to vector<16x1xf32>
    %5 = arith.divf %3, %4 : vector<16x1xf32>
    %cst_2 = arith.constant 9.99999974E-6 : f32
    %6 = vector.broadcast %cst_2 : f32 to vector<16x1xf32>
    %7 = arith.addf %5, %6 : vector<16x1xf32>
    %8 = math.rsqrt %7 : vector<16x1xf32>
    %9 = vector.broadcast %8 : vector<16x1xf32> to vector<16x128xf32>
    %10 = arith.mulf %0, %9 : vector<16x128xf32>
    %c0_3 = arith.constant 0 : index
    %c0_4 = arith.constant 0 : index
    %11 = vector.load %arg2[%c0_3, %c0_4] : memref<1x128xf32, #tpu.memory_space<vmem>>, vector<1x128xf32>
    %12 = vector.broadcast %11 : vector<1x128xf32> to vector<16x128xf32>
    %13 = arith.mulf %10, %12 : vector<16x128xf32>
    %c0_5 = arith.constant 0 : index
    %c0_6 = arith.constant 0 : index
    %14 = vector.load %arg5[%c0_5, %c0_6] : memref<128x128xf32, #tpu.memory_space<vmem>>, vector<128x128xf32>
    %cst_7 = arith.constant dense<0.000000e+00> : vector<16x128xf32>
    %15 = tpu.matmul %13, %14, %cst_7 {dimension_numbers = #tpu.dot_dimension_numbers<[1], [0], [0], [1], [0, 0, 1, 1], [], []>} : vector<16x128xf32>, vector<128x128xf32>, vector<16x128xf32> -> vector<16x128xf32>
    %c0_8 = arith.constant 0 : index
    %c0_9 = arith.constant 0 : index
    %16 = vector.load %arg6[%c0_8, %c0_9] : memref<128x64xf32, #tpu.memory_space<vmem>>, vector<128x64xf32>
    %cst_10 = arith.constant dense<0.000000e+00> : vector<16x64xf32>
    %17 = tpu.matmul %13, %16, %cst_10 {dimension_numbers = #tpu.dot_dimension_numbers<[1], [0], [0], [1], [0, 0, 1, 1], [], []>} : vector<16x128xf32>, vector<128x64xf32>, vector<16x64xf32> -> vector<16x64xf32>
    %c0_11 = arith.constant 0 : index
    %c0_12 = arith.constant 0 : index
    %18 = vector.load %arg7[%c0_11, %c0_12] : memref<128x64xf32, #tpu.memory_space<vmem>>, vector<128x64xf32>
    %cst_13 = arith.constant dense<0.000000e+00> : vector<16x64xf32>
    %19 = tpu.matmul %13, %18, %cst_13 {dimension_numbers = #tpu.dot_dimension_numbers<[1], [0], [0], [1], [0, 0, 1, 1], [], []>} : vector<16x128xf32>, vector<128x64xf32>, vector<16x64xf32> -> vector<16x64xf32>
    %c0_14 = arith.constant 0 : index
    %c0_15 = arith.constant 0 : index
    %20 = vector.load %arg3[%c0_14, %c0_15] : memref<16x32xf32, #tpu.memory_space<vmem>>, vector<16x32xf32>
    %c0_16 = arith.constant 0 : index
    %c0_17 = arith.constant 0 : index
    %21 = vector.load %arg4[%c0_16, %c0_17] : memref<16x32xf32, #tpu.memory_space<vmem>>, vector<16x32xf32>
    %22 = vector.extract_strided_slice %15 {offsets = [0, 0], sizes = [16, 32], strides = [1, 1]} : vector<16x128xf32> to vector<16x32xf32>
    %23 = vector.extract_strided_slice %22 {offsets = [0, 16], sizes = [16, 16], strides = [1, 1]} : vector<16x32xf32> to vector<16x16xf32>
    %24 = vector.extract_strided_slice %22 {offsets = [0, 0], sizes = [16, 16], strides = [1, 1]} : vector<16x32xf32> to vector<16x16xf32>
    %25 = tpu.concatenate %23, %24 in 1 : vector<16x16xf32>, vector<16x16xf32> -> vector<16x32xf32>
    %26 = arith.mulf %22, %20 : vector<16x32xf32>
    %27 = arith.mulf %25, %21 : vector<16x32xf32>
    %28 = arith.addf %26, %27 : vector<16x32xf32>
    %29 = vector.extract_strided_slice %15 {offsets = [0, 32], sizes = [16, 32], strides = [1, 1]} : vector<16x128xf32> to vector<16x32xf32>
    %30 = vector.extract_strided_slice %29 {offsets = [0, 16], sizes = [16, 16], strides = [1, 1]} : vector<16x32xf32> to vector<16x16xf32>
    %31 = vector.extract_strided_slice %29 {offsets = [0, 0], sizes = [16, 16], strides = [1, 1]} : vector<16x32xf32> to vector<16x16xf32>
    %32 = tpu.concatenate %30, %31 in 1 : vector<16x16xf32>, vector<16x16xf32> -> vector<16x32xf32>
    %33 = arith.mulf %29, %20 : vector<16x32xf32>
    %34 = arith.mulf %32, %21 : vector<16x32xf32>
    %35 = arith.addf %33, %34 : vector<16x32xf32>
    %36 = vector.extract_strided_slice %15 {offsets = [0, 64], sizes = [16, 32], strides = [1, 1]} : vector<16x128xf32> to vector<16x32xf32>
    %37 = vector.extract_strided_slice %36 {offsets = [0, 16], sizes = [16, 16], strides = [1, 1]} : vector<16x32xf32> to vector<16x16xf32>
    %38 = vector.extract_strided_slice %36 {offsets = [0, 0], sizes = [16, 16], strides = [1, 1]} : vector<16x32xf32> to vector<16x16xf32>
    %39 = tpu.concatenate %37, %38 in 1 : vector<16x16xf32>, vector<16x16xf32> -> vector<16x32xf32>
    %40 = arith.mulf %36, %20 : vector<16x32xf32>
    %41 = arith.mulf %39, %21 : vector<16x32xf32>
    %42 = arith.addf %40, %41 : vector<16x32xf32>
    %43 = vector.extract_strided_slice %15 {offsets = [0, 96], sizes = [16, 32], strides = [1, 1]} : vector<16x128xf32> to vector<16x32xf32>
    %44 = vector.extract_strided_slice %43 {offsets = [0, 16], sizes = [16, 16], strides = [1, 1]} : vector<16x32xf32> to vector<16x16xf32>
    %45 = vector.extract_strided_slice %43 {offsets = [0, 0], sizes = [16, 16], strides = [1, 1]} : vector<16x32xf32> to vector<16x16xf32>
    %46 = tpu.concatenate %44, %45 in 1 : vector<16x16xf32>, vector<16x16xf32> -> vector<16x32xf32>
    %47 = arith.mulf %43, %20 : vector<16x32xf32>
    %48 = arith.mulf %46, %21 : vector<16x32xf32>
    %49 = arith.addf %47, %48 : vector<16x32xf32>
    %50 = tpu.concatenate %28, %35, %42, %49 in 1 : vector<16x32xf32>, vector<16x32xf32>, vector<16x32xf32>, vector<16x32xf32> -> vector<16x128xf32>
    %c0_18 = arith.constant 0 : index
    %c0_19 = arith.constant 0 : index
    %51 = vector.load %arg8[%c0_18, %c0_19] : memref<16x128xf32, #tpu.memory_space<vmem>>, vector<16x128xf32>
    tpu.vector_store %arg8[%c0_18, %c0_19], %50 {strides = array<i32>} : memref<16x128xf32, #tpu.memory_space<vmem>>, vector<16x128xf32>,
    %52 = vector.extract_strided_slice %17 {offsets = [0, 0], sizes = [16, 32], strides = [1, 1]} : vector<16x64xf32> to vector<16x32xf32>
    %53 = vector.extract_strided_slice %52 {offsets = [0, 16], sizes = [16, 16], strides = [1, 1]} : vector<16x32xf32> to vector<16x16xf32>
    %54 = vector.extract_strided_slice %52 {offsets = [0, 0], sizes = [16, 16], strides = [1, 1]} : vector<16x32xf32> to vector<16x16xf32>
    %55 = tpu.concatenate %53, %54 in 1 : vector<16x16xf32>, vector<16x16xf32> -> vector<16x32xf32>
    %56 = arith.mulf %52, %20 : vector<16x32xf32>
    %57 = arith.mulf %55, %21 : vector<16x32xf32>
    %58 = arith.addf %56, %57 : vector<16x32xf32>
    %59 = vector.extract_strided_slice %17 {offsets = [0, 32], sizes = [16, 32], strides = [1, 1]} : vector<16x64xf32> to vector<16x32xf32>
    %60 = vector.extract_strided_slice %59 {offsets = [0, 16], sizes = [16, 16], strides = [1, 1]} : vector<16x32xf32> to vector<16x16xf32>
    %61 = vector.extract_strided_slice %59 {offsets = [0, 0], sizes = [16, 16], strides = [1, 1]} : vector<16x32xf32> to vector<16x16xf32>
    %62 = tpu.concatenate %60, %61 in 1 : vector<16x16xf32>, vector<16x16xf32> -> vector<16x32xf32>
    %63 = arith.mulf %59, %20 : vector<16x32xf32>
    %64 = arith.mulf %62, %21 : vector<16x32xf32>
    %65 = arith.addf %63, %64 : vector<16x32xf32>
    %66 = tpu.concatenate %58, %65 in 1 : vector<16x32xf32>, vector<16x32xf32> -> vector<16x64xf32>
    %c0_20 = arith.constant 0 : index
    %c0_21 = arith.constant 0 : index
    %67 = vector.load %arg9[%c0_20, %c0_21] : memref<16x64xf32, #tpu.memory_space<vmem>>, vector<16x64xf32>
    tpu.vector_store %arg9[%c0_20, %c0_21], %66 {strides = array<i32>} : memref<16x64xf32, #tpu.memory_space<vmem>>, vector<16x64xf32>,
    %c0_22 = arith.constant 0 : index
    %c0_23 = arith.constant 0 : index
    %68 = vector.load %arg10[%c0_22, %c0_23] : memref<16x64xf32, #tpu.memory_space<vmem>>, vector<16x64xf32>
    tpu.vector_store %arg10[%c0_22, %c0_23], %19 {strides = array<i32>} : memref<16x64xf32, #tpu.memory_space<vmem>>, vector<16x64xf32>,
    return
  }
  func.func @transform_0(%arg0: i32) -> (i32, i32) {
    %c0_i32 = arith.constant 0 : i32
    %c0_i32_0 = arith.constant 0 : i32
    return %arg0, %c0_i32 : i32, i32
  }
  func.func @transform_1(%arg0: i32) -> (i32, i32) {
    %c0_i32 = arith.constant 0 : i32
    %c0_i32_0 = arith.constant 0 : i32
    %c0_i32_1 = arith.constant 0 : i32
    return %c0_i32, %c0_i32_0 : i32, i32
  }
  func.func @transform_2(%arg0: i32) -> (i32, i32) {
    %c1_i32 = arith.constant 1 : i32
    %c0_i32 = arith.constant 0 : i32
    %0 = arith.cmpi eq, %c1_i32, %c0_i32 : i32
    %c1_i32_0 = arith.constant 1 : i32
    %1 = arith.select %0, %c1_i32_0, %c1_i32 : i32
    %2 = arith.remsi %arg0, %1 : i32
    %c0_i32_1 = arith.constant 0 : i32
    %3 = arith.cmpi ne, %2, %c0_i32_1 : i32
    %c0_i32_2 = arith.constant 0 : i32
    %4 = arith.cmpi slt, %2, %c0_i32_2 : i32
    %c0_i32_3 = arith.constant 0 : i32
    %5 = arith.cmpi slt, %1, %c0_i32_3 : i32
    %6 = arith.xori %4, %5 : i1
    %7 = arith.andi %6, %3 : i1
    %8 = arith.addi %2, %1 : i32
    %9 = arith.select %7, %8, %2 : i32
    %c0_i32_4 = arith.constant 0 : i32
    %c0_i32_5 = arith.constant 0 : i32
    return %9, %c0_i32_4 : i32, i32
  }
  func.func @transform_3(%arg0: i32) -> (i32, i32) {
    %c1_i32 = arith.constant 1 : i32
    %c0_i32 = arith.constant 0 : i32
    %0 = arith.cmpi eq, %c1_i32, %c0_i32 : i32
    %c1_i32_0 = arith.constant 1 : i32
    %1 = arith.select %0, %c1_i32_0, %c1_i32 : i32
    %2 = arith.remsi %arg0, %1 : i32
    %c0_i32_1 = arith.constant 0 : i32
    %3 = arith.cmpi ne, %2, %c0_i32_1 : i32
    %c0_i32_2 = arith.constant 0 : i32
    %4 = arith.cmpi slt, %2, %c0_i32_2 : i32
    %c0_i32_3 = arith.constant 0 : i32
    %5 = arith.cmpi slt, %1, %c0_i32_3 : i32
    %6 = arith.xori %4, %5 : i1
    %7 = arith.andi %6, %3 : i1
    %8 = arith.addi %2, %1 : i32
    %9 = arith.select %7, %8, %2 : i32
    %c0_i32_4 = arith.constant 0 : i32
    %c0_i32_5 = arith.constant 0 : i32
    return %9, %c0_i32_4 : i32, i32
  }
  func.func @transform_4(%arg0: i32) -> (i32, i32) {
    %c0_i32 = arith.constant 0 : i32
    %c0_i32_0 = arith.constant 0 : i32
    %c0_i32_1 = arith.constant 0 : i32
    return %c0_i32, %c0_i32_0 : i32, i32
  }
  func.func @transform_5(%arg0: i32) -> (i32, i32) {
    %c0_i32 = arith.constant 0 : i32
    %c0_i32_0 = arith.constant 0 : i32
    %c0_i32_1 = arith.constant 0 : i32
    return %c0_i32, %c0_i32_0 : i32, i32
  }
  func.func @transform_6(%arg0: i32) -> (i32, i32) {
    %c0_i32 = arith.constant 0 : i32
    %c0_i32_0 = arith.constant 0 : i32
    %c0_i32_1 = arith.constant 0 : i32
    return %c0_i32, %c0_i32_0 : i32, i32
  }
  func.func @transform_7(%arg0: i32) -> (i32, i32) {
    %c0_i32 = arith.constant 0 : i32
    %c0_i32_0 = arith.constant 0 : i32
    return %arg0, %c0_i32 : i32, i32
  }
  func.func @transform_8(%arg0: i32) -> (i32, i32) {
    %c0_i32 = arith.constant 0 : i32
    %c0_i32_0 = arith.constant 0 : i32
    return %arg0, %c0_i32 : i32, i32
  }
  func.func @transform_9(%arg0: i32) -> (i32, i32) {
    %c0_i32 = arith.constant 0 : i32
    %c0_i32_0 = arith.constant 0 : i32
    return %arg0, %c0_i32 : i32, i32
  }
}

</mosaic_0001>

<llo_original>
// kernel: tpu_custom_call.1
$region0: #{tpu_custom_call.1}
  #allocation0 [shape = 'u32[]', space=smem, size = 0x4, offset = 0x4, fixed_abs, tag = 'smem constant byte address 0x4 - core index']
  #allocation1 [shape = 'u32[72,128]{1,0:T(1,128)}', space=vmem, size = 0x9000, scoped, tag = 'internal scratch']
  %s0 = inlined_call_operand.vmem [shape: f32[32,128], index: 0, kind: input, shape index: {}]
  %s1 = inlined_call_operand.vmem [shape: f32[1,128], index: 1, kind: input, shape index: {}]
  %s2 = inlined_call_operand.vmem [shape: f32[16,32], index: 2, kind: input, shape index: {}]
  %s3 = inlined_call_operand.vmem [shape: f32[16,32], index: 3, kind: input, shape index: {}]
  %s4 = inlined_call_operand.vmem [shape: f32[128,128], index: 4, kind: input, shape index: {}]
  %s5 = inlined_call_operand.vmem [shape: f32[128,64], index: 5, kind: input, shape index: {}]
  %s6 = inlined_call_operand.vmem [shape: f32[128,64], index: 6, kind: input, shape index: {}]
  %s7 = inlined_call_operand.hbm [shape: f32[32,128], index: 7, kind: output, shape index: {0}]
  %s8 = inlined_call_operand.hbm [shape: f32[32,64], index: 8, kind: output, shape index: {1}]
  %s9 = inlined_call_operand.hbm [shape: f32[32,64], index: 9, kind: output, shape index: {2}]
  %10 = xla_tuple %s7, %s8, %s9
  %s11 = sld [smem:[#allocation0]]
  $region77: #{tpu_custom_call.1} parent=0
    _
  %s13 = ssub.s32 1, %s11
  %s14 = scalar_select 0, %s13, %s11
  $region1: #{tpu_custom_call.1} parent=0
    #allocation2 [shape = 'u8[16384]{0}', space=vmem, size = 0x4000, scoped, tag = 'output window, operand 0']
    #allocation3 [shape = 's32[2]{0}', space=sflag, size = 0x8, scoped, tag = 'scoped memory for tpu_custom_call.1']
    #allocation4 [shape = 'u8[16384]{0}', space=vmem, size = 0x4000, scoped, tag = 'output window, operand 1']
    #allocation5 [shape = 's32[2]{0}', space=sflag, size = 0x8, scoped, tag = 'scoped memory for tpu_custom_call.1']
    #allocation6 [shape = 'u8[16384]{0}', space=vmem, size = 0x4000, scoped, tag = 'output window, operand 2']
    %15 = vsyncpa [#allocation3], 0
    %s16 = scalar_lea.sflag [#allocation3], 1
    %17 = vsyncpa %s16, 0
    %18 = vsyncpa [#allocation5], 0
    %s19 = scalar_lea.sflag [#allocation5], 1
    %20 = vsyncpa %s19, 0
    loop: start=0, step=1, limit=4
    $region2: #{tpu_custom_call.1} parent=1 // loop_pre_header
      _
    $region3: #{tpu_custom_call.1} parent=1 // loop_header
      %s22 = sphi 0, %s26
      %p23 = scmp.ge.s32.totalorder %s22, 4
      %s32 = sphi 0, %s34
      %s35 = sphi 0, %s32
      %s36 = sphi 0, %s35
      %s52 = sphi 0, %s36
      %s56 = sphi 0, %s56
      %s58 = sphi 0, %s56
      %s59 = sphi 0, %s58
      %s73 = sphi 0, %s59
      %s77 = sphi 0, %s77
      %s79 = sphi 0, %s77
      %s80 = sphi 0, %s79
      %s94 = sphi 0, %s80
      %s98 = sphi 0, %s98
      %s100 = sphi 0, %s98
      %s101 = sphi 0, %s100
      %s115 = sphi 0, %s101
      %s119 = sphi 0, %s119
      %s121 = sphi 0, %s119
      %s122 = sphi 0, %s121
      %s136 = sphi 0, %s122
      %s140 = sphi 0, %s140
      %s142 = sphi 0, %s140
      %s143 = sphi 0, %s142
      %s157 = sphi 0, %s143
      %s161 = sphi 0, %s161
      %s163 = sphi 0, %s161
      %s164 = sphi 0, %s163
      %s178 = sphi 0, %s164
      %s184 = sphi 0, %s186
      %s187 = sphi 0, %s184
      %s188 = sphi 0, %s187
      %s204 = sphi 0, %s188
      %s210 = sphi 0, %s212
      %s213 = sphi 0, %s210
      %s214 = sphi 0, %s213
      %s230 = sphi 0, %s214
      %s236 = sphi 0, %s238
      %s239 = sphi 0, %s236
      %s240 = sphi 0, %s239
      %s256 = sphi 0, %s240
    $region4: #{tpu_custom_call.1} parent=1 // loop_header_branch
      %25 = sbr.rel (%p23) target = $region8
    $region5: #{tpu_custom_call.1} parent=1 // loop_body
      %s27 = ssub.s32 %s22, 1
      %s28 = ssub.s32 %s22, 2
      %s29 = sadd.s32 %s22, 1
      %s30 = ssub.s32 %s22, %s29
      %p31 = scmp.eq.s32.totalorder %s30, 0
      %s33 = sadd.s32 %s32, 1
      %s34 = scalar_select %p31, %s32, %s33
      %p37 = pneg %p31
      %p38 = scmp.eq.s32.totalorder %s22, 1
      %p39 = por %p37, %p38
      %p40 = scmp.ne.s32.totalorder %s32, %s35
      %p41 = scmp.eq.s32.totalorder %s22, 0
      %p42 = por %p40, %p41
      %p43 = scmp.ne.s32.totalorder %s32, %s35
      %p44 = scmp.eq.s32.totalorder %s27, 1
      %p45 = por %p43, %p44
      %p46 = scmp.ne.s32.totalorder %s35, %s36
      %p47 = scmp.eq.s32.totalorder %s27, 0
      %p48 = por %p46, %p47
      %p49 = scmp.ne.s32.totalorder %s35, %s36
      %p50 = scmp.eq.s32.totalorder %s28, 1
      %p51 = por %p49, %p50
      %p53 = scmp.ne.s32.totalorder %s36, %s52
      %p54 = scmp.eq.s32.totalorder %s28, 0
      %p55 = por %p53, %p54
      %s57 = sadd.s32 %s56, 1
      %p60 = scmp.eq.s32.totalorder %s22, 1
      %p61 = scmp.ne.s32.totalorder %s56, %s58
      %p62 = scmp.eq.s32.totalorder %s22, 0
      %p63 = por %p61, %p62
      %p64 = scmp.ne.s32.totalorder %s56, %s58
      %p65 = scmp.eq.s32.totalorder %s27, 1
      %p66 = por %p64, %p65
      %p67 = scmp.ne.s32.totalorder %s58, %s59
      %p68 = scmp.eq.s32.totalorder %s27, 0
      %p69 = por %p67, %p68
      %p70 = scmp.ne.s32.totalorder %s58, %s59
      %p71 = scmp.eq.s32.totalorder %s28, 1
      %p72 = por %p70, %p71
      %p74 = scmp.ne.s32.totalorder %s59, %s73
      %p75 = scmp.eq.s32.totalorder %s28, 0
      %p76 = por %p74, %p75
      %s78 = sadd.s32 %s77, 1
      %p81 = scmp.eq.s32.totalorder %s22, 1
      %p82 = scmp.ne.s32.totalorder %s77, %s79
      %p83 = scmp.eq.s32.totalorder %s22, 0
      %p84 = por %p82, %p83
      %p85 = scmp.ne.s32.totalorder %s77, %s79
      %p86 = scmp.eq.s32.totalorder %s27, 1
      %p87 = por %p85, %p86
      %p88 = scmp.ne.s32.totalorder %s79, %s80
      %p89 = scmp.eq.s32.totalorder %s27, 0
      %p90 = por %p88, %p89
      %p91 = scmp.ne.s32.totalorder %s79, %s80
      %p92 = scmp.eq.s32.totalorder %s28, 1
      %p93 = por %p91, %p92
      %p95 = scmp.ne.s32.totalorder %s80, %s94
      %p96 = scmp.eq.s32.totalorder %s28, 0
      %p97 = por %p95, %p96
      %s99 = sadd.s32 %s98, 1
      %p102 = scmp.eq.s32.totalorder %s22, 1
      %p103 = scmp.ne.s32.totalorder %s98, %s100
      %p104 = scmp.eq.s32.totalorder %s22, 0
      %p105 = por %p103, %p104
      %p106 = scmp.ne.s32.totalorder %s98, %s100
      %p107 = scmp.eq.s32.totalorder %s27, 1
      %p108 = por %p106, %p107
      %p109 = scmp.ne.s32.totalorder %s100, %s101
      %p110 = scmp.eq.s32.totalorder %s27, 0
      %p111 = por %p109, %p110
      %p112 = scmp.ne.s32.totalorder %s100, %s101
      %p113 = scmp.eq.s32.totalorder %s28, 1
      %p114 = por %p112, %p113
      %p116 = scmp.ne.s32.totalorder %s101, %s115
      %p117 = scmp.eq.s32.totalorder %s28, 0
      %p118 = por %p116, %p117
      %s120 = sadd.s32 %s119, 1
      %p123 = scmp.eq.s32.totalorder %s22, 1
      %p124 = scmp.ne.s32.totalorder %s119, %s121
      %p125 = scmp.eq.s32.totalorder %s22, 0
      %p126 = por %p124, %p125
      %p127 = scmp.ne.s32.totalorder %s119, %s121
      %p128 = scmp.eq.s32.totalorder %s27, 1
      %p129 = por %p127, %p128
      %p130 = scmp.ne.s32.totalorder %s121, %s122
      %p131 = scmp.eq.s32.totalorder %s27, 0
      %p132 = por %p130, %p131
      %p133 = scmp.ne.s32.totalorder %s121, %s122
      %p134 = scmp.eq.s32.totalorder %s28, 1
      %p135 = por %p133, %p134
      %p137 = scmp.ne.s32.totalorder %s122, %s136
      %p138 = scmp.eq.s32.totalorder %s28, 0
      %p139 = por %p137, %p138
      %s141 = sadd.s32 %s140, 1
      %p144 = scmp.eq.s32.totalorder %s22, 1
      %p145 = scmp.ne.s32.totalorder %s140, %s142
      %p146 = scmp.eq.s32.totalorder %s22, 0
      %p147 = por %p145, %p146
      %p148 = scmp.ne.s32.totalorder %s140, %s142
      %p149 = scmp.eq.s32.totalorder %s27, 1
      %p150 = por %p148, %p149
      %p151 = scmp.ne.s32.totalorder %s142, %s143
      %p152 = scmp.eq.s32.totalorder %s27, 0
      %p153 = por %p151, %p152
      %p154 = scmp.ne.s32.totalorder %s142, %s143
      %p155 = scmp.eq.s32.totalorder %s28, 1
      %p156 = por %p154, %p155
      %p158 = scmp.ne.s32.totalorder %s143, %s157
      %p159 = scmp.eq.s32.totalorder %s28, 0
      %p160 = por %p158, %p159
      %s162 = sadd.s32 %s161, 1
      %p165 = scmp.eq.s32.totalorder %s22, 1
      %p166 = scmp.ne.s32.totalorder %s161, %s163
      %p167 = scmp.eq.s32.totalorder %s22, 0
      %p168 = por %p166, %p167
      %p169 = scmp.ne.s32.totalorder %s161, %s163
      %p170 = scmp.eq.s32.totalorder %s27, 1
      %p171 = por %p169, %p170
      %p172 = scmp.ne.s32.totalorder %s163, %s164
      %p173 = scmp.eq.s32.totalorder %s27, 0
      %p174 = por %p172, %p173
      %p175 = scmp.ne.s32.totalorder %s163, %s164
      %p176 = scmp.eq.s32.totalorder %s28, 1
      %p177 = por %p175, %p176
      %p179 = scmp.ne.s32.totalorder %s164, %s178
      %p180 = scmp.eq.s32.totalorder %s28, 0
      %p181 = por %p179, %p180
      %s182 = ssub.s32 %s22, %s29
      %p183 = scmp.eq.s32.totalorder %s182, 0
      %s185 = sadd.s32 %s184, 1
      %s186 = scalar_select %p183, %s184, %s185
      %p189 = pneg %p183
      %p190 = scmp.eq.s32.totalorder %s22, 1
      %p191 = por %p189, %p190
      %p192 = scmp.ne.s32.totalorder %s184, %s187
      %p193 = scmp.eq.s32.totalorder %s22, 0
      %p194 = por %p192, %p193
      %p195 = scmp.ne.s32.totalorder %s184, %s187
      %p196 = scmp.eq.s32.totalorder %s27, 1
      %p197 = por %p195, %p196
      %p198 = scmp.ne.s32.totalorder %s187, %s188
      %p199 = scmp.eq.s32.totalorder %s27, 0
      %p200 = por %p198, %p199
      %p201 = scmp.ne.s32.totalorder %s187, %s188
      %p202 = scmp.eq.s32.totalorder %s28, 1
      %p203 = por %p201, %p202
      %p205 = scmp.ne.s32.totalorder %s188, %s204
      %p206 = scmp.eq.s32.totalorder %s28, 0
      %p207 = por %p205, %p206
      %s208 = ssub.s32 %s22, %s29
      %p209 = scmp.eq.s32.totalorder %s208, 0
      %s211 = sadd.s32 %s210, 1
      %s212 = scalar_select %p209, %s210, %s211
      %p215 = pneg %p209
      %p216 = scmp.eq.s32.totalorder %s22, 1
      %p217 = por %p215, %p216
      %p218 = scmp.ne.s32.totalorder %s210, %s213
      %p219 = scmp.eq.s32.totalorder %s22, 0
      %p220 = por %p218, %p219
      %p221 = scmp.ne.s32.totalorder %s210, %s213
      %p222 = scmp.eq.s32.totalorder %s27, 1
      %p223 = por %p221, %p222
      %p224 = scmp.ne.s32.totalorder %s213, %s214
      %p225 = scmp.eq.s32.totalorder %s27, 0
      %p226 = por %p224, %p225
      %p227 = scmp.ne.s32.totalorder %s213, %s214
      %p228 = scmp.eq.s32.totalorder %s28, 1
      %p229 = por %p227, %p228
      %p231 = scmp.ne.s32.totalorder %s214, %s230
      %p232 = scmp.eq.s32.totalorder %s28, 0
      %p233 = por %p231, %p232
      %s234 = ssub.s32 %s22, %s29
      %p235 = scmp.eq.s32.totalorder %s234, 0
      %s237 = sadd.s32 %s236, 1
      %s238 = scalar_select %p235, %s236, %s237
      %p241 = pneg %p235
      %p242 = scmp.eq.s32.totalorder %s22, 1
      %p243 = por %p241, %p242
      %p244 = scmp.ne.s32.totalorder %s236, %s239
      %p245 = scmp.eq.s32.totalorder %s22, 0
      %p246 = por %p244, %p245
      %p247 = scmp.ne.s32.totalorder %s236, %s239
      %p248 = scmp.eq.s32.totalorder %s27, 1
      %p249 = por %p247, %p248
      %p250 = scmp.ne.s32.totalorder %s239, %s240
      %p251 = scmp.eq.s32.totalorder %s27, 0
      %p252 = por %p250, %p251
      %p253 = scmp.ne.s32.totalorder %s239, %s240
      %p254 = scmp.eq.s32.totalorder %s28, 1
      %p255 = por %p253, %p254
      %p257 = scmp.ne.s32.totalorder %s240, %s256
      %p258 = scmp.eq.s32.totalorder %s28, 0
      %p259 = por %p257, %p258
      %p260 = scmp.le.s32.totalorder 1, %s22
      %p261 = scmp.lt.s32.totalorder %s22, 3
      %p262 = pnand %p260, %p261
      %p263 = pneg %p262
      // Predicated region
      $region9: #{tpu_custom_call.1} parent=5 // pred_check
        _
      $region10: #{tpu_custom_call.1} parent=5 // pred_check_branch
        %265 = sbr.rel (%p262) target = $region12
      $region11: #{tpu_custom_call.1} parent=5 // pred_region
        %s266 = ssub.s32 %s22, 1
        // Predicated region
        $region13: #{tpu_custom_call.1} parent=11 // pred_check
          %p267 = pneg %p69
        $region14: #{tpu_custom_call.1} parent=11 // pred_check_branch
          %269 = sbr.rel (%p267) target = $region16
        $region15: #{tpu_custom_call.1} parent=11 // pred_region
          _
        $region16: #{tpu_custom_call.1} parent=11 // pred_fallthru
          _
        // Predicated region
        $region17: #{tpu_custom_call.1} parent=11 // pred_check
          %p270 = pneg %p90
        $region18: #{tpu_custom_call.1} parent=11 // pred_check_branch
          %272 = sbr.rel (%p270) target = $region20
        $region19: #{tpu_custom_call.1} parent=11 // pred_region
          _
        $region20: #{tpu_custom_call.1} parent=11 // pred_fallthru
          _
        // Predicated region
        $region21: #{tpu_custom_call.1} parent=11 // pred_check
          %p273 = pneg %p111
        $region22: #{tpu_custom_call.1} parent=11 // pred_check_branch
          %275 = sbr.rel (%p273) target = $region24
        $region23: #{tpu_custom_call.1} parent=11 // pred_region
          _
        $region24: #{tpu_custom_call.1} parent=11 // pred_fallthru
          _
        // Predicated region
        $region25: #{tpu_custom_call.1} parent=11 // pred_check
          %p276 = pneg %p132
        $region26: #{tpu_custom_call.1} parent=11 // pred_check_branch
          %278 = sbr.rel (%p276) target = $region28
        $region27: #{tpu_custom_call.1} parent=11 // pred_region
          _
        $region28: #{tpu_custom_call.1} parent=11 // pred_fallthru
          _
        // Predicated region
        $region29: #{tpu_custom_call.1} parent=11 // pred_check
          %p279 = pneg %p153
        $region30: #{tpu_custom_call.1} parent=11 // pred_check_branch
          %281 = sbr.rel (%p279) target = $region32
        $region31: #{tpu_custom_call.1} parent=11 // pred_region
          _
        $region32: #{tpu_custom_call.1} parent=11 // pred_fallthru
          _
        // Predicated region
        $region33: #{tpu_custom_call.1} parent=11 // pred_check
          %p282 = pneg %p174
        $region34: #{tpu_custom_call.1} parent=11 // pred_check_branch
          %284 = sbr.rel (%p282) target = $region36
        $region35: #{tpu_custom_call.1} parent=11 // pred_region
          _
        $region36: #{tpu_custom_call.1} parent=11 // pred_fallthru
          _
      $region12: #{tpu_custom_call.1} parent=5 // pred_fallthru
        _
      %p285 = scmp.lt.s32.totalorder %s22, 2
      // Predicated region
      $region37: #{tpu_custom_call.1} parent=5 // pred_check
        %p286 = pneg %p285
      $region38: #{tpu_custom_call.1} parent=5 // pred_check_branch
        %288 = sbr.rel (%p286) target = $region40
      $region39: #{tpu_custom_call.1} parent=5 // pred_region
        // Predicated region
        $region41: #{tpu_custom_call.1} parent=39 // pred_check
          %p289 = pneg %p42
        $region42: #{tpu_custom_call.1} parent=39 // pred_check_branch
          %291 = sbr.rel (%p289) target = $region44
        $region43: #{tpu_custom_call.1} parent=39 // pred_region
          %s292 = smul.u32 2, %s22
          %p293 = scmp.lt.s32.totalorder %s292, 3
          %s294 = scalar_select %p293, %s292, 3
          %s295 = smul.addr %s294, 8
          %s296 = scalar_lea.vmem %s0, %s295
          %s297 = smul.u32 2, %s22
        $region44: #{tpu_custom_call.1} parent=39 // pred_fallthru
          _
      $region40: #{tpu_custom_call.1} parent=5 // pred_fallthru
        _
      %p298 = scmp.le.s32.totalorder 1, %s22
      %p299 = scmp.lt.s32.totalorder %s22, 3
      %p300 = pnand %p298, %p299
      %p301 = pneg %p300
      // Predicated region
      $region45: #{tpu_custom_call.1} parent=5 // pred_check
        _
      $region46: #{tpu_custom_call.1} parent=5 // pred_check_branch
        %303 = sbr.rel (%p300) target = $region48
      $region47: #{tpu_custom_call.1} parent=5 // pred_region
        %s304 = ssub.s32 %s22, 1
        %s305 = smul.u32 2, %s27
        %p306 = scmp.lt.s32.totalorder %s305, 3
        %s307 = scalar_select %p306, %s305, 3
        %s308 = smul.addr %s307, 8
        %s309 = scalar_lea.vmem %s0, %s308
        %p310 = pneg %p48
        %p311 = pneg %p45
        %p312 = pneg %p69
        %p313 = pneg %p66
        %p314 = pneg %p90
        %p315 = pneg %p87
        %p316 = pneg %p111
        %p317 = pneg %p108
        %p318 = pneg %p132
        %p319 = pneg %p129
        %p320 = pneg %p153
        %p321 = pneg %p150
        %p322 = pneg %p174
        %p323 = pneg %p171
        %p324 = pneg %p200
        %p325 = pneg %p197
        %s326 = sand.u32 %s187, 1
        %s327 = scalar_lea.sflag [#allocation3], %s326
        %s328 = sand.u32 %s187, 1
        %s329 = smul.addr %s328, 16
        %s330 = scalar_lea.vmem [#allocation2], %s329
        %p331 = pneg %p226
        %p332 = pneg %p223
        %s333 = sand.u32 %s27, 1
        %s334 = scalar_lea.sflag [#allocation5], %s333
        %s335 = sand.u32 %s213, 1
        %s336 = smul.addr %s335, 16
        %s337 = scalar_lea.vmem [#allocation4], %s336
        %p338 = pneg %p252
        %p339 = pneg %p249
        %s340 = sand.u32 %s27, 1
        %s341 = scalar_lea.sflag [#allocation5], %s340
        %s342 = sand.u32 %s239, 1
        %s343 = smul.addr %s342, 16
        %s344 = scalar_lea.vmem [#allocation6], %s343
        %s345 = smul.u32 2, %s27
        %p346 = scmp.lt.s32.totalorder %s345, 3
        %s347 = scalar_select %p346, %s345, 3
        %s348 = smul.addr %s347, 8
        %s349 = scalar_lea.vmem %s0, %s348
        %s350 = smul.u32 2, %s27
        %s351 = smul.u32 2, %s27
        %s352 = smul.u32 2, %s27
        %s353 = smul.u32 2, %s27
        %v354 = vld [vmem:[%s349] sm:$0xff]
        %v355 = vld [vmem:[%s349 + $0x8] sm:$0xff]
        %v356 = vmul.f32 %v354, %v354
        %v357 = vmul.f32 %v355, %v355
        %358 = vadd.xlane.f32.xlu0 %v356
        %v359 = vpop.xlane.xlu0 %358
        %360 = vadd.xlane.f32.xlu0 %v357
        %v361 = vpop.xlane.xlu0 %360
        %v362 = vrcp.pop 128.0
        %v363 = vmul.f32 128.0, %v362
        %v364 = vsub.f32 1.0, %v363
        %v365 = vmul.f32 %v362, %v364
        %v366 = vadd.f32 %v362, %v365
        %vm367 = vweird.f32 %v362
        %v368 = vsel %vm367, %v362, %v366
        %v369 = vmul.f32 %v359, %v368
        %v370 = vmul.f32 %v361, %v368
        %v371 = vadd.f32 %v369, 1e-05
        %v372 = vadd.f32 %v370, 1e-05
        %v373 = vrsqrt.pop %v371
        %v374 = vmul.f32 %v373, %v371
        %v375 = vmul.f32 %v374, %v373
        %v376 = vmul.f32 0.5, %v375
        %v377 = vsub.f32 1.5, %v376
        %v378 = vmul.f32 %v373, %v377
        %vm379 = vweird.f32 %v371
        %vm380 = vweird.f32 %v373
        %vm381 = vmor %vm379, %vm380
        %v382 = vsel %vm381, %v373, %v378
        %v383 = vrsqrt.pop %v372
        %v384 = vmul.f32 %v383, %v372
        %v385 = vmul.f32 %v384, %v383
        %v386 = vmul.f32 0.5, %v385
        %v387 = vsub.f32 1.5, %v386
        %v388 = vmul.f32 %v383, %v387
        %vm389 = vweird.f32 %v372
        %vm390 = vweird.f32 %v383
        %vm391 = vmor %vm389, %vm390
        %v392 = vsel %vm391, %v383, %v388
        %v393 = vmul.f32 %v354, %v382
        %v394 = vmul.f32 %v355, %v392
        %v395 = vld [vmem:[%s1] sm:$0x1]
        %v397 = vperm.slane %v395, 0
        %v399 = vmul.f32 %v393, %v397
        %v400 = vmul.f32 %v394, %v397
        %v401 = vld [vmem:[%s4] sm:$0xff]
        %v402 = vld [vmem:[%s4 + $0x8] sm:$0xff]
        %v403 = vld [vmem:[%s4 + $0x10] sm:$0xff]
        %v404 = vld [vmem:[%s4 + $0x18] sm:$0xff]
        %v405 = vld [vmem:[%s4 + $0x20] sm:$0xff]
        %v406 = vld [vmem:[%s4 + $0x28] sm:$0xff]
        %v407 = vld [vmem:[%s4 + $0x30] sm:$0xff]
        %v408 = vld [vmem:[%s4 + $0x38] sm:$0xff]
        %v409 = vld [vmem:[%s4 + $0x40] sm:$0xff]
        %v410 = vld [vmem:[%s4 + $0x48] sm:$0xff]
        %v411 = vld [vmem:[%s4 + $0x50] sm:$0xff]
        %v412 = vld [vmem:[%s4 + $0x58] sm:$0xff]
        %v413 = vld [vmem:[%s4 + $0x60] sm:$0xff]
        %v414 = vld [vmem:[%s4 + $0x68] sm:$0xff]
        %v415 = vld [vmem:[%s4 + $0x70] sm:$0xff]
        %v416 = vld [vmem:[%s4 + $0x78] sm:$0xff]
        %417 = vmatpush.msra.mxu0 %v416
        %418 = vmatpush.msra.mxu0 %v415
        %419 = vmatpush.msra.mxu0 %v414
        %420 = vmatpush.msra.mxu0 %v413
        %421 = vmatpush.msra.mxu0 %v412
        %422 = vmatpush.msra.mxu0 %v411
        %423 = vmatpush.msra.mxu0 %v410
        %424 = vmatpush.msra.mxu0 %v409
        %425 = vmatpush.msra.mxu0 %v408
        %426 = vmatpush.msra.mxu0 %v407
        %427 = vmatpush.msra.mxu0 %v406
        %428 = vmatpush.msra.mxu0 %v405
        %429 = vmatpush.msra.mxu0 %v404
        %430 = vmatpush.msra.mxu0 %v403
        %431 = vmatpush.msra.mxu0 %v402
        %432 = vmatpush.msra.mxu0 %v401
        %433 = vmatmul.f32.gmra.mxu0 %v399
        %v434 = vpop.f32.mrf.mxu0
        %v435 = vadd.f32 0.0, %v434
        %436 = vmatmul.f32.gmra.mxu0 %v400
        %v437 = vpop.f32.mrf.mxu0
        %v438 = vadd.f32 0.0, %v437
        %439 = vdwg.mxu0
        %v440 = vld [vmem:[%s5] sm:$0xff]
        %v441 = vld [vmem:[%s5 + $0x8] sm:$0xff]
        %v442 = vld [vmem:[%s5 + $0x10] sm:$0xff]
        %v443 = vld [vmem:[%s5 + $0x18] sm:$0xff]
        %v444 = vld [vmem:[%s5 + $0x20] sm:$0xff]
        %v445 = vld [vmem:[%s5 + $0x28] sm:$0xff]
        %v446 = vld [vmem:[%s5 + $0x30] sm:$0xff]
        %v447 = vld [vmem:[%s5 + $0x38] sm:$0xff]
        %v448 = vld [vmem:[%s5 + $0x40] sm:$0xff]
        %v449 = vld [vmem:[%s5 + $0x48] sm:$0xff]
        %v450 = vld [vmem:[%s5 + $0x50] sm:$0xff]
        %v451 = vld [vmem:[%s5 + $0x58] sm:$0xff]
        %v452 = vld [vmem:[%s5 + $0x60] sm:$0xff]
        %v453 = vld [vmem:[%s5 + $0x68] sm:$0xff]
        %v454 = vld [vmem:[%s5 + $0x70] sm:$0xff]
        %v455 = vld [vmem:[%s5 + $0x78] sm:$0xff]
        %456 = vmatpush.msra.mxu0 %v455
        %457 = vmatpush.msra.mxu0 %v454
        %458 = vmatpush.msra.mxu0 %v453
        %459 = vmatpush.msra.mxu0 %v452
        %460 = vmatpush.msra.mxu0 %v451
        %461 = vmatpush.msra.mxu0 %v450
        %462 = vmatpush.msra.mxu0 %v449
        %463 = vmatpush.msra.mxu0 %v448
        %464 = vmatpush.msra.mxu0 %v447
        %465 = vmatpush.msra.mxu0 %v446
        %466 = vmatpush.msra.mxu0 %v445
        %467 = vmatpush.msra.mxu0 %v444
        %468 = vmatpush.msra.mxu0 %v443
        %469 = vmatpush.msra.mxu0 %v442
        %470 = vmatpush.msra.mxu0 %v441
        %471 = vmatpush.msra.mxu0 %v440
        %472 = vmatmul.f32.gmra.mxu0 %v399
        %v473 = vpop.f32.mrf.mxu0
        %v474 = vadd.f32 0.0, %v473
        %475 = vmatmul.f32.gmra.mxu0 %v400
        %v476 = vpop.f32.mrf.mxu0
        %v477 = vadd.f32 0.0, %v476
        %478 = vdwg.mxu0
        %v479 = vld [vmem:[%s6] sm:$0xff]
        %v480 = vld [vmem:[%s6 + $0x8] sm:$0xff]
        %v481 = vld [vmem:[%s6 + $0x10] sm:$0xff]
        %v482 = vld [vmem:[%s6 + $0x18] sm:$0xff]
        %v483 = vld [vmem:[%s6 + $0x20] sm:$0xff]
        %v484 = vld [vmem:[%s6 + $0x28] sm:$0xff]
        %v485 = vld [vmem:[%s6 + $0x30] sm:$0xff]
        %v486 = vld [vmem:[%s6 + $0x38] sm:$0xff]
        %v487 = vld [vmem:[%s6 + $0x40] sm:$0xff]
        %v488 = vld [vmem:[%s6 + $0x48] sm:$0xff]
        %v489 = vld [vmem:[%s6 + $0x50] sm:$0xff]
        %v490 = vld [vmem:[%s6 + $0x58] sm:$0xff]
        %v491 = vld [vmem:[%s6 + $0x60] sm:$0xff]
        %v492 = vld [vmem:[%s6 + $0x68] sm:$0xff]
        %v493 = vld [vmem:[%s6 + $0x70] sm:$0xff]
        %v494 = vld [vmem:[%s6 + $0x78] sm:$0xff]
        %495 = vmatpush.msra.mxu0 %v494
        %496 = vmatpush.msra.mxu0 %v493
        %497 = vmatpush.msra.mxu0 %v492
        %498 = vmatpush.msra.mxu0 %v491
        %499 = vmatpush.msra.mxu0 %v490
        %500 = vmatpush.msra.mxu0 %v489
        %501 = vmatpush.msra.mxu0 %v488
        %502 = vmatpush.msra.mxu0 %v487
        %503 = vmatpush.msra.mxu0 %v486
        %504 = vmatpush.msra.mxu0 %v485
        %505 = vmatpush.msra.mxu0 %v484
        %506 = vmatpush.msra.mxu0 %v483
        %507 = vmatpush.msra.mxu0 %v482
        %508 = vmatpush.msra.mxu0 %v481
        %509 = vmatpush.msra.mxu0 %v480
        %510 = vmatpush.msra.mxu0 %v479
        %511 = vmatmul.f32.gmra.mxu0 %v399
        %v512 = vpop.f32.mrf.mxu0
        %v513 = vadd.f32 0.0, %v512
        %514 = vmatmul.f32.gmra.mxu0 %v400
        %v515 = vpop.f32.mrf.mxu0
        %v516 = vadd.f32 0.0, %v515
        %517 = vdwg.mxu0
        %v518 = vld [vmem:[%s2] sm:$0xff]
        %v519 = vld [vmem:[%s2 + $0x8] sm:$0xff]
        %v520 = vld [vmem:[%s3] sm:$0xff]
        %v521 = vld [vmem:[%s3 + $0x8] sm:$0xff]
        %524 = vrot.lane.b32.xlu0 %v435, 112
        %v525 = vpop.permute.xlu0 %524
        %526 = vrot.lane.b32.xlu0 %v438, 112
        %v527 = vpop.permute.xlu0 %526
        %530 = vrot.lane.b32.xlu0 %v435, 16
        %v531 = vpop.permute.xlu0 %530
        %532 = vrot.lane.b32.xlu0 %v438, 16
        %v533 = vpop.permute.xlu0 %532
        %vm536 = vcmask 130048
        %v537 = vsel %vm536, %v525, %v531
        %v538 = vsel %vm536, %v527, %v533
        %v539 = vmul.f32 %v435, %v518
        %v540 = vmul.f32 %v438, %v519
        %v541 = vmul.f32 %v537, %v520
        %v542 = vmul.f32 %v538, %v521
        %v543 = vadd.f32 %v539, %v541
        %v544 = vadd.f32 %v540, %v542
        %545 = vrot.lane.b32.xlu0 %v435, 80
        %v546 = vpop.permute.xlu0 %545
        %547 = vrot.lane.b32.xlu0 %v438, 80
        %v548 = vpop.permute.xlu0 %547
        %v551 = vsel %vm536, %v546, %v525
        %v552 = vsel %vm536, %v548, %v527
        %555 = vrot.lane.b32.xlu0 %v518, 32
        %v556 = vpop.permute.xlu0 %555
        %557 = vrot.lane.b32.xlu0 %v519, 32
        %v558 = vpop.permute.xlu0 %557
        %v561 = vmul.f32 %v435, %v556
        %v562 = vmul.f32 %v438, %v558
        %v563 = vmul.f32 %v551, %v520
        %v564 = vmul.f32 %v552, %v521
        %567 = vrot.lane.b32.xlu0 %v563, 32
        %v568 = vpop.permute.xlu0 %567
        %569 = vrot.lane.b32.xlu0 %v564, 32
        %v570 = vpop.permute.xlu0 %569
        %v573 = vadd.f32 %v561, %v568
        %v574 = vadd.f32 %v562, %v570
        %575 = vrot.lane.b32.xlu0 %v435, 48
        %v576 = vpop.permute.xlu0 %575
        %577 = vrot.lane.b32.xlu0 %v438, 48
        %v578 = vpop.permute.xlu0 %577
        %v581 = vsel %vm536, %v576, %v546
        %v582 = vsel %vm536, %v578, %v548
        %583 = vrot.lane.b32.xlu0 %v518, 64
        %v584 = vpop.permute.xlu0 %583
        %585 = vrot.lane.b32.xlu0 %v519, 64
        %v586 = vpop.permute.xlu0 %585
        %v589 = vmul.f32 %v435, %v584
        %v590 = vmul.f32 %v438, %v586
        %v591 = vmul.f32 %v581, %v520
        %v592 = vmul.f32 %v582, %v521
        %595 = vrot.lane.b32.xlu0 %v591, 64
        %v596 = vpop.permute.xlu0 %595
        %597 = vrot.lane.b32.xlu0 %v592, 64
        %v598 = vpop.permute.xlu0 %597
        %v601 = vadd.f32 %v589, %v596
        %v602 = vadd.f32 %v590, %v598
        %v603 = vsel %vm536, %v531, %v576
        %v604 = vsel %vm536, %v533, %v578
        %605 = vrot.lane.b32.xlu0 %v518, 96
        %v606 = vpop.permute.xlu0 %605
        %607 = vrot.lane.b32.xlu0 %v519, 96
        %v608 = vpop.permute.xlu0 %607
        %v611 = vmul.f32 %v435, %v606
        %v612 = vmul.f32 %v438, %v608
        %v613 = vmul.f32 %v603, %v520
        %v614 = vmul.f32 %v604, %v521
        %617 = vrot.lane.b32.xlu0 %v613, 96
        %v618 = vpop.permute.xlu0 %617
        %619 = vrot.lane.b32.xlu0 %v614, 96
        %v620 = vpop.permute.xlu0 %619
        %v623 = vadd.f32 %v611, %v618
        %v624 = vadd.f32 %v612, %v620
        %vm625 = vcmask 261120
        %v626 = vsel %vm625, %v543, %v573
        %v627 = vsel %vm625, %v544, %v574
        %vm628 = vcmask 523264
        %v629 = vsel %vm628, %v626, %v601
        %v630 = vsel %vm628, %v627, %v602
        %vm631 = vcmask 785408
        %v632 = vsel %vm631, %v629, %v623
        %v633 = vsel %vm631, %v630, %v624
        %634 = vst [vmem:[%s330] sm:$0xff] %v632
        %635 = vst [vmem:[%s330 + $0x8] sm:$0xff] %v633
        %638 = vrot.lane.b32.xlu0 %v474, 112
        %v639 = vpop.permute.xlu0 %638
        %640 = vrot.lane.b32.xlu0 %v477, 112
        %v641 = vpop.permute.xlu0 %640
        %644 = vrot.lane.b32.xlu0 %v474, 16
        %v645 = vpop.permute.xlu0 %644
        %646 = vrot.lane.b32.xlu0 %v477, 16
        %v647 = vpop.permute.xlu0 %646
        %v650 = vsel %vm536, %v639, %v645
        %v651 = vsel %vm536, %v641, %v647
        %v652 = vmul.f32 %v474, %v518
        %v653 = vmul.f32 %v477, %v519
        %v654 = vmul.f32 %v650, %v520
        %v655 = vmul.f32 %v651, %v521
        %v656 = vadd.f32 %v652, %v654
        %v657 = vadd.f32 %v653, %v655
        %658 = vrot.lane.b32.xlu0 %v474, 80
        %v659 = vpop.permute.xlu0 %658
        %660 = vrot.lane.b32.xlu0 %v477, 80
        %v661 = vpop.permute.xlu0 %660
        %v664 = vsel %vm536, %v659, %v639
        %v665 = vsel %vm536, %v661, %v641
        %v666 = vmul.f32 %v474, %v556
        %v667 = vmul.f32 %v477, %v558
        %v668 = vmul.f32 %v664, %v520
        %v669 = vmul.f32 %v665, %v521
        %672 = vrot.lane.b32.xlu0 %v668, 32
        %v673 = vpop.permute.xlu0 %672
        %674 = vrot.lane.b32.xlu0 %v669, 32
        %v675 = vpop.permute.xlu0 %674
        %v678 = vadd.f32 %v666, %v673
        %v679 = vadd.f32 %v667, %v675
        %v680 = vsel %vm625, %v656, %v678
        %v681 = vsel %vm625, %v657, %v679
        %682 = vst.msk [vmem:[%s337] sm:$0xff] %vm628, %v680
        %683 = vst.msk [vmem:[%s337 + $0x8] sm:$0xff] %vm628, %v681
        %684 = vst.msk [vmem:[%s344] sm:$0xff] %vm628, %v513
        %685 = vst.msk [vmem:[%s344 + $0x8] sm:$0xff] %vm628, %v516
        %s686 = sand.u32 %s187, 1
        %s687 = scalar_lea.sflag [#allocation3], %s686
        %s688 = sand.u32 %s187, 1
        %s689 = smul.addr %s688, 16
        %s690 = scalar_lea.vmem [#allocation2], %s689
        %s691 = sand.u32 %s27, 1
        %s692 = scalar_lea.sflag [#allocation5], %s691
        %s693 = sand.u32 %s213, 1
        %s694 = smul.addr %s693, 16
        %s695 = scalar_lea.vmem [#allocation4], %s694
        %s696 = sand.u32 %s27, 1
        %s697 = scalar_lea.sflag [#allocation5], %s696
        %s698 = sand.u32 %s239, 1
        %s699 = smul.addr %s698, 16
        %s700 = scalar_lea.vmem [#allocation6], %s699
        // Predicated region
        $region49: #{tpu_custom_call.1} parent=47 // pred_check
          %p701 = pneg %p197
        $region50: #{tpu_custom_call.1} parent=47 // pred_check_branch
          %703 = sbr.rel (%p701) target = $region52
        $region51: #{tpu_custom_call.1} parent=47 // pred_region
          %s704 = smul.u32 2, %s27
          %706 = vsyncadd %s687, 0
          %s707 = smul.addr %s704, 8
          %s708 = scalar_lea.hbm %s7, %s707
          %s709 = sshll.u32 %s690, 4
          %s710 = int_to_ptr.vmem [resolvable:$true] %s709
          %s711 = sshll.u32 %s708, 4
          %s712 = int_to_ptr.hbm [resolvable:$true] %s711
          %717 = dma.vmem_to_hbm [thread:$0]  %s710, 256, %s712, %s687, 128, 128, 8
        $region52: #{tpu_custom_call.1} parent=47 // pred_fallthru
          _
        // Predicated region
        $region53: #{tpu_custom_call.1} parent=47 // pred_check
          %p718 = pneg %p223
        $region54: #{tpu_custom_call.1} parent=47 // pred_check_branch
          %720 = sbr.rel (%p718) target = $region56
        $region55: #{tpu_custom_call.1} parent=47 // pred_region
          %s721 = smul.u32 2, %s27
          %723 = vsyncadd %s692, 0
          %s724 = smul.addr %s721, 8
          %s725 = scalar_lea.hbm %s8, %s724
          %s726 = sshll.u32 %s695, 4
          %s727 = int_to_ptr.vmem [resolvable:$true] %s726
          %s728 = sshll.u32 %s725, 4
          %s729 = int_to_ptr.hbm [resolvable:$true] %s728
          %734 = dma.vmem_to_hbm [thread:$0]  %s727, 256, %s729, %s692, 128, 128, 8
        $region56: #{tpu_custom_call.1} parent=47 // pred_fallthru
          _
        // Predicated region
        $region57: #{tpu_custom_call.1} parent=47 // pred_check
          %p735 = pneg %p249
        $region58: #{tpu_custom_call.1} parent=47 // pred_check_branch
          %737 = sbr.rel (%p735) target = $region60
        $region59: #{tpu_custom_call.1} parent=47 // pred_region
          %s738 = smul.u32 2, %s27
          %740 = vsyncadd %s697, 0
          %s741 = smul.addr %s738, 8
          %s742 = scalar_lea.hbm %s9, %s741
          %s743 = sshll.u32 %s700, 4
          %s744 = int_to_ptr.vmem [resolvable:$true] %s743
          %s745 = sshll.u32 %s742, 4
          %s746 = int_to_ptr.hbm [resolvable:$true] %s745
          %751 = dma.vmem_to_hbm [thread:$0]  %s744, 256, %s746, %s697, 128, 128, 8
        $region60: #{tpu_custom_call.1} parent=47 // pred_fallthru
          _
      $region48: #{tpu_custom_call.1} parent=5 // pred_fallthru
        _
      %p752 = scmp.le.s32.totalorder 2, %s22
      // Predicated region
      $region61: #{tpu_custom_call.1} parent=5 // pred_check
        %p753 = pneg %p752
      $region62: #{tpu_custom_call.1} parent=5 // pred_check_branch
        %755 = sbr.rel (%p753) target = $region64
      $region63: #{tpu_custom_call.1} parent=5 // pred_region
        %s756 = ssub.s32 %s22, 2
        // Predicated region
        $region65: #{tpu_custom_call.1} parent=63 // pred_check
          %p757 = pneg %p203
        $region66: #{tpu_custom_call.1} parent=63 // pred_check_branch
          %759 = sbr.rel (%p757) target = $region68
        $region67: #{tpu_custom_call.1} parent=63 // pred_region
          %s760 = sand.u32 %s188, 1
          %s761 = scalar_lea.sflag [#allocation3], %s760
          %s762 = sand.u32 %s188, 1
          %s763 = smul.addr %s762, 16
          %s764 = scalar_lea.vmem [#allocation2], %s763
          %766 = dma.done %s761, 256
        $region68: #{tpu_custom_call.1} parent=63 // pred_fallthru
          _
        // Predicated region
        $region69: #{tpu_custom_call.1} parent=63 // pred_check
          %p767 = pneg %p229
        $region70: #{tpu_custom_call.1} parent=63 // pred_check_branch
          %769 = sbr.rel (%p767) target = $region72
        $region71: #{tpu_custom_call.1} parent=63 // pred_region
          %s770 = sand.u32 %s28, 1
          %s771 = scalar_lea.sflag [#allocation5], %s770
          %s772 = sand.u32 %s214, 1
          %s773 = smul.addr %s772, 16
          %s774 = scalar_lea.vmem [#allocation4], %s773
          %776 = dma.done %s771, 256
        $region72: #{tpu_custom_call.1} parent=63 // pred_fallthru
          _
        // Predicated region
        $region73: #{tpu_custom_call.1} parent=63 // pred_check
          %p777 = pneg %p255
        $region74: #{tpu_custom_call.1} parent=63 // pred_check_branch
          %779 = sbr.rel (%p777) target = $region76
        $region75: #{tpu_custom_call.1} parent=63 // pred_region
          %s780 = sand.u32 %s28, 1
          %s781 = scalar_lea.sflag [#allocation5], %s780
          %s782 = sand.u32 %s240, 1
          %s783 = smul.addr %s782, 16
          %s784 = scalar_lea.vmem [#allocation6], %s783
          %786 = dma.done %s781, 256
        $region76: #{tpu_custom_call.1} parent=63 // pred_fallthru
          _
      $region64: #{tpu_custom_call.1} parent=5 // pred_fallthru
        _
    $region6: #{tpu_custom_call.1} parent=1 // loop_footer
      %s26 = sadd.s32 1, %s22
    $region7: #{tpu_custom_call.1} parent=1 // loop_footer_branch
      %21 = sbr.rel target = $region3
    $region8: #{tpu_custom_call.1} parent=1 // loop_exit
      _
    %787 = vsyncpa [#allocation3], 1
    %s788 = scalar_lea.sflag [#allocation3], 1
    %789 = vsyncpa %s788, 1
    %790 = vsyncpa [#allocation5], 1
    %s791 = scalar_lea.sflag [#allocation5], 1
    %792 = vsyncpa %s791, 1

</llo_original>
